<compile_context>
chip_gen: v7x
topology: tpu7x:2x2x1
jax: 0.10.0
libtpu: 0.0.40
codegen_flags: <defaults>
</compile_context>

<pallas_src>
import jax
import jax.numpy as jnp
import numpy as np
from jax import lax
from jax.experimental import pallas as pl
from jax.experimental.pallas import tpu as pltpu


def _round_up(x, m):
    return (x + m - 1) // m * m


def _num_tensorcores():
    # Batch-splitting the "parallel" grid axis only helps where more than one
    # TensorCore exists per chip (v7x).  On single-TC v5e/v6e the grid is a
    # serial loop, so splitting batch just doubles sequential step count.
    try:
        kind = jax.devices()[0].device_kind.lower()
        if "7" in kind:      # v7x: 2 TensorCores / chip
            return 2
    except Exception:
        pass
    return 1


def _vmem_limit_bytes(n_bytes):
    # Request what the tiles need (2x headroom for double-buffering slack),
    # never below the 32 MiB scoped default, capped well under physical VMEM.
    return int(min(100 * 2**20, max(32 * 2**20, 2 * n_bytes)))


def _pad2(w, rows, cols):
    return jnp.pad(w, ((0, rows - w.shape[0]), (0, cols - w.shape[1])))


# ---------------------------------------------------------------------------
# Stage 1 kernels: batched input-gate projection (bf16 GEMM, f32 accumulation)
# ---------------------------------------------------------------------------
def _folded_proj_kernel(x_ref, weff_ref, beff_ref, ig_ref):
    # igates = x @ (We @ Wih) + (be @ Wih + bih) : one MXU GEMM per row tile.
    acc = jnp.dot(x_ref[...], weff_ref[...], preferred_element_type=jnp.float32)
    ig_ref[...] = (acc + beff_ref[...]).astype(ig_ref.dtype)


def _two_gemm_proj_kernel(x_ref, we_ref, be_ref, wih_ref, bih_ref, ig_ref):
    emb = jnp.dot(x_ref[...], we_ref[...],
                  preferred_element_type=jnp.float32) + be_ref[...]
    # TODO(synk): nn.Dropout on `emb` skipped (identity / eval mode).
    acc = jnp.dot(emb.astype(jnp.bfloat16), wih_ref[...],
                  preferred_element_type=jnp.float32)
    ig_ref[...] = (acc + bih_ref[...]).astype(ig_ref.dtype)


# ---------------------------------------------------------------------------
# Stage 2: time-chunked GRU recurrence (single fused bf16 h @ (H,3H) per step)
# ---------------------------------------------------------------------------
def _make_gru_recurrent_kernel(t_chunk, hp, seq_len, needs_mask, unroll):
    def kernel(ig_ref, whh_ref, bhh_ref, out_ref, hn_ref, h_scr):
        c = pl.program_id(1)  # time-chunk index (sequential "arbitrary" axis)

        @pl.when(c == 0)
        def _():
            h_scr[...] = jnp.zeros_like(h_scr)

        bsz = h_scr.shape[0]
        # Hoist grid-invariant weight load and bias broadcast out of the time
        # loop (JAX does not CSE broadcast_in_dim).
        whh = whh_ref[...]                                      # (Hp, 3Hp) bf16
        bhh = jnp.broadcast_to(bhh_ref[...], (bsz, 3 * hp))     # (B, 3Hp) f32
        t0 = c * t_chunk

        def step(i, h):
            ig = ig_ref[i].astype(jnp.float32)                  # (B, 3Hp)
            hg = jnp.dot(h.astype(jnp.bfloat16), whh,
                         preferred_element_type=jnp.float32) + bhh
            # PyTorch GRU gate convention; slices are lane-aligned (hp % 128 == 0).
            r = jax.nn.sigmoid(ig[:, :hp] + hg[:, :hp])
            z = jax.nn.sigmoid(ig[:, hp:2 * hp] + hg[:, hp:2 * hp])
            n = jnp.tanh(ig[:, 2 * hp:] + r * hg[:, 2 * hp:])
            h_new = (1.0 - z) * n + z * h
            if needs_mask:
                # Tail-of-sequence guard for the cdiv'd time grid: padded time
                # steps must not advance the carried hidden state.
                m = ((t0 + i) < seq_len).astype(jnp.float32)
                h_new = m * h_new + (1.0 - m) * h
            out_ref[i] = h_new.astype(out_ref.dtype)
            return h_new

        h_final = lax.fori_loop(0, t_chunk, step, h_scr[...], unroll=unroll)
        h_scr[...] = h_final

        @pl.when(c == pl.num_programs(1) - 1)
        def _():
            hn_ref[...] = h_final.astype(hn_ref.dtype)

    return kernel


# ---------------------------------------------------------------------------
# Forward wrapper
# ---------------------------------------------------------------------------
def encoder_rnn_forward(x, params):
    """x: (b, seq, F) float32 -> (output (b, seq, H), h_n (1, b, H))."""
    b, seq_len, F = x.shape
    H = params["we"].shape[1]

    bp = _round_up(b, 8)      # sublane-aligned batch
    Hp = _round_up(H, 128)    # lane-aligned hidden
    Fp = _round_up(F, 128)    # lane-aligned feature

    # Time chunking: cdiv grid (no degenerate t_chunk=1 for awkward seq_len);
    # tail steps are masked inside the kernel.
    t_chunk = min(seq_len, 32)
    n_tchunks = int(pl.cdiv(seq_len, t_chunk))
    seq_p = n_tchunks * t_chunk
    needs_mask = seq_p != seq_len

    # Fused hidden-gate weights (padded per-gate so slices stay lane aligned).
    whh = jnp.concatenate(
        [_pad2(params[k], Hp, Hp) for k in ("whr", "whz", "whn")],
        axis=1).astype(jnp.bfloat16)                             # (Hp, 3Hp)
    bhh = jnp.concatenate(
        [_pad2(params[k], 1, Hp) for k in ("bhr", "bhz", "bhn")], axis=1)  # f32

    # Fold the embedding Linear into the input gates when it saves FLOPs
    # (F < 1.5*H): exact algebraic identity (dropout is identity here).
    fold = 2 * F < 3 * H
    if fold:
        w_list, b_list = [], []
        for wk, bk in (("wir", "bir"), ("wiz", "biz"), ("win", "bin")):
            w_list.append(_pad2(params["we"] @ params[wk], Fp, Hp))
            b_list.append(_pad2(params["be"] @ params[wk] + params[bk], 1, Hp))
        weff = jnp.concatenate(w_list, axis=1).astype(jnp.bfloat16)  # (Fp, 3Hp)
        beff = jnp.concatenate(b_list, axis=1)                       # (1, 3Hp) f32
    else:
        we = _pad2(params["we"], Fp, Hp).astype(jnp.bfloat16)
        be = _pad2(params["be"], 1, Hp)
        wih = jnp.concatenate(
            [_pad2(params[k], Hp, Hp) for k in ("wir", "wiz", "win")],
            axis=1).astype(jnp.bfloat16)
        bih = jnp.concatenate(
            [_pad2(params[k], 1, Hp) for k in ("bir", "biz", "bin")], axis=1)

    # ---- Stage 1: one batched bf16 GEMM over all (time, batch) rows --------
    x_p = jnp.pad(x, ((0, bp - b), (0, seq_p - seq_len), (0, Fp - F)))
    x_tm = jnp.transpose(x_p.astype(jnp.bfloat16), (1, 0, 2))   # (seq_p, bp, Fp)
    rows = seq_p * bp
    x2d = x_tm.reshape(rows, Fp)

    # r_tile = bp * (divisor of t_chunk)  =>  r_tile divides rows exactly, so
    # the igates reshape below is a free view (no HBM slice copy).
    d = 1
    for dd in range(1, t_chunk + 1):
        if t_chunk % dd == 0 and bp * dd <= 1024:
            d = dd
    r_tile = bp * d

    if fold:
        s1_bytes = 2 * (r_tile * Fp * 2 + r_tile * 3 * Hp * 2
                        + Fp * 3 * Hp * 2 + 3 * Hp * 4)
        ig2d = pl.pallas_call(
            _folded_proj_kernel,
            out_shape=jax.ShapeDtypeStruct((rows, 3 * Hp), jnp.bfloat16),
            grid_spec=pltpu.PrefetchScalarGridSpec(
                num_scalar_prefetch=0,
                grid=(rows // r_tile,),
                in_specs=[
                    pl.BlockSpec((r_tile, Fp), lambda r: (r, 0)),
                    pl.BlockSpec((Fp, 3 * Hp), lambda r: (0, 0)),
                    pl.BlockSpec((1, 3 * Hp), lambda r: (0, 0)),
                ],
                out_specs=pl.BlockSpec((r_tile, 3 * Hp), lambda r: (r, 0)),
            ),
            compiler_params=pltpu.CompilerParams(
                dimension_semantics=("parallel",),
                vmem_limit_bytes=_vmem_limit_bytes(s1_bytes)),
        )(x2d, weff, beff)
    else:
        s1_bytes = 2 * (r_tile * Fp * 2 + r_tile * 3 * Hp * 2
                        + Fp * Hp * 2 + Hp * 3 * Hp * 2 + Hp * 4 + 3 * Hp * 4)
        ig2d = pl.pallas_call(
            _two_gemm_proj_kernel,
            out_shape=jax.ShapeDtypeStruct((rows, 3 * Hp), jnp.bfloat16),
            grid_spec=pltpu.PrefetchScalarGridSpec(
                num_scalar_prefetch=0,
                grid=(rows // r_tile,),
                in_specs=[
                    pl.BlockSpec((r_tile, Fp), lambda r: (r, 0)),
                    pl.BlockSpec((Fp, Hp), lambda r: (0, 0)),
                    pl.BlockSpec((1, Hp), lambda r: (0, 0)),
                    pl.BlockSpec((Hp, 3 * Hp), lambda r: (0, 0)),
                    pl.BlockSpec((1, 3 * Hp), lambda r: (0, 0)),
                ],
                out_specs=pl.BlockSpec((r_tile, 3 * Hp), lambda r: (r, 0)),
            ),
            compiler_params=pltpu.CompilerParams(
                dimension_semantics=("parallel",),
                vmem_limit_bytes=_vmem_limit_bytes(s1_bytes)),
        )(x2d, we, be, wih, bih)

    igates = ig2d.reshape(seq_p, bp, 3 * Hp)    # free view (r_tile | rows)

    # ---- Stage 2: sequential GRU recurrence, time-chunked ------------------
    # Split batch across cores only on multi-TC chips; keep chunks 16-aligned
    # so bf16 sublane tiling of the igates block stays unmasked.
    n_bchunks = 2 if (_num_tensorcores() >= 2 and bp % 32 == 0) else 1
    b_chunk = bp // n_bchunks

    # Bound vreg pressure: full unroll only while the per-step (B, 3Hp) live
    # set is small; otherwise partial unroll keeps LLO visibility w/o spills.
    unroll = True if b_chunk * 3 * Hp <= 4096 else min(4, t_chunk)

    kernel = _make_gru_recurrent_kernel(t_chunk, Hp, seq_len, needs_mask, unroll)
    s2_bytes = (2 * (t_chunk * b_chunk * 3 * Hp * 2 + Hp * 3 * Hp * 2
                     + 3 * Hp * 4 + t_chunk * b_chunk * Hp * 4 + b_chunk * Hp * 4)
                + b_chunk * Hp * 4)
    out_tm, h_last = pl.pallas_call(
        kernel,
        out_shape=(
            jax.ShapeDtypeStruct((seq_p, bp, Hp), jnp.float32),
            jax.ShapeDtypeStruct((bp, Hp), jnp.float32),
        ),
        grid_spec=pltpu.PrefetchScalarGridSpec(
            num_scalar_prefetch=0,
            grid=(n_bchunks, n_tchunks),
            in_specs=[
                pl.BlockSpec((t_chunk, b_chunk, 3 * Hp),
                             lambda bc, c: (c, bc, 0)),
                pl.BlockSpec((Hp, 3 * Hp), lambda bc, c: (0, 0)),
                pl.BlockSpec((1, 3 * Hp), lambda bc, c: (0, 0)),
            ],
            out_specs=[
                pl.BlockSpec((t_chunk, b_chunk, Hp),
                             lambda bc, c: (c, bc, 0)),
                pl.BlockSpec((b_chunk, Hp), lambda bc, c: (bc, 0)),
            ],
            scratch_shapes=[pltpu.VMEM((b_chunk, Hp), jnp.float32)],
        ),
        compiler_params=pltpu.CompilerParams(
            dimension_semantics=("parallel", "arbitrary"),
            vmem_limit_bytes=_vmem_limit_bytes(s2_bytes)),
    )(igates, whh, bhh)

    output = jnp.transpose(out_tm[:seq_len, :b, :H], (1, 0, 2))  # (b, seq, H)
    h_n = h_last[:b, :H][None]                                   # (1, b, H)
    return output, h_n


# ---------------------------------------------------------------------------
# Parameters / reference
# ---------------------------------------------------------------------------
def init_params(key, input_size, hidden_size):
    """Deterministic synthetic parameters matching nn.Linear + nn.GRU shapes."""
    ks = jax.random.split(key, 16)
    s = 0.1

    def rnd(k, shape):
        return (s * jax.random.normal(k, shape)).astype(jnp.float32)

    F, H = input_size, hidden_size
    params = {
        # embedding: nn.Linear(F, H) -> weight (H, F); stored pre-transposed (F, H)
        "we": rnd(ks[0], (F, H)),
        "be": rnd(ks[1], (1, H)),
        # GRU weight_ih_l0 is (3H, H) stacked [r|z|n]; stored as three (H, H),
        # pre-transposed so the kernel computes x @ W (== x @ W_ir^T etc.)
        "wir": rnd(ks[2], (H, H)), "wiz": rnd(ks[3], (H, H)), "win": rnd(ks[4], (H, H)),
        "whr": rnd(ks[5], (H, H)), "whz": rnd(ks[6], (H, H)), "whn": rnd(ks[7], (H, H)),
        "bir": rnd(ks[8], (1, H)), "biz": rnd(ks[9], (1, H)), "bin": rnd(ks[10], (1, H)),
        "bhr": rnd(ks[11], (1, H)), "bhz": rnd(ks[12], (1, H)), "bhn": rnd(ks[13], (1, H)),
    }
    return params


def reference_forward(x, p):
    """Pure-JAX f32 reference mirroring the PyTorch forward (dropout = identity)."""
    b, seq_len, F = x.shape
    H = p["we"].shape[1]
    emb = jnp.einsum("bsf,fh->bsh", x, p["we"]) + p["be"]

    def step(h, x_t):
        i_r = x_t @ p["wir"] + p["bir"]
        i_z = x_t @ p["wiz"] + p["biz"]
        i_n = x_t @ p["win"] + p["bin"]
        h_r = h @ p["whr"] + p["bhr"]
        h_z = h @ p["whz"] + p["bhz"]
        h_n = h @ p["whn"] + p["bhn"]
        r = jax.nn.sigmoid(i_r + h_r)
        z = jax.nn.sigmoid(i_z + h_z)
        n = jnp.tanh(i_n + r * h_n)
        h_new = (1.0 - z) * n + z * h
        return h_new, h_new

    h0 = jnp.zeros((b, H), jnp.float32)
    h_last, outs = jax.lax.scan(step, h0, jnp.transpose(emb, (1, 0, 2)))
    return jnp.transpose(outs, (1, 0, 2)), h_last[None]


if __name__ == "__main__":
    # Small shapes consistent with forward(): input (b, seq_len, feature_dim).
    batch, seq_len, input_size, hidden_size = 2, 8, 16, 32

    key = jax.random.PRNGKey(0)
    k_x, k_p = jax.random.split(key)
    x = jax.random.normal(k_x, (batch, seq_len, input_size), dtype=jnp.float32)
    params = init_params(k_p, input_size, hidden_size)

    output, h_n = encoder_rnn_forward(x, params)
    output = jax.block_until_ready(output)
    h_n = jax.block_until_ready(h_n)

    ref_out, ref_hn = reference_forward(x, params)
    # bf16 weights / igates (f32 accumulation) -> loosened tolerance vs f32 ref.
    np.testing.assert_allclose(np.asarray(output), np.asarray(ref_out), rtol=2e-2, atol=2e-2)
    np.testing.assert_allclose(np.asarray(h_n), np.asarray(ref_hn), rtol=2e-2, atol=2e-2)

    assert output.shape == (batch, seq_len, hidden_size)
    assert h_n.shape == (1, batch, hidden_size)
    print("KERNEL_OK")
</pallas_src>

<mosaic_0001>
module attributes {stable_mosaic.version = 11 : i64} {
  func.func @_folded_proj_kernel(%arg0: i32, %arg1: memref<64x128xbf16, #tpu.memory_space<vmem>>, %arg2: memref<128x384xbf16, #tpu.memory_space<vmem>>, %arg3: memref<1x384xf32, #tpu.memory_space<vmem>>, %arg4: memref<64x384xbf16, #tpu.memory_space<vmem>>) attributes {dimension_semantics = [#tpu.dimension_semantics<parallel>], iteration_bounds = array<i64: 1>, scalar_prefetch = 0 : i64, scratch_operands = 0 : i64, tpu.core_type = #tpu.core_type<tc>, window_params = [{transform_indices = @transform_0, window_bounds = array<i64: 64, 128>}, {pipeline_mode = #tpu.pipeline_mode<synchronous>, transform_indices = @transform_1, window_bounds = array<i64: 128, 384>}, {pipeline_mode = #tpu.pipeline_mode<synchronous>, transform_indices = @transform_2, window_bounds = array<i64: 1, 384>}, {transform_indices = @transform_3, window_bounds = array<i64: 64, 384>}]} {
    %c0 = arith.constant 0 : index
    %c0_0 = arith.constant 0 : index
    %0 = vector.load %arg1[%c0, %c0_0] : memref<64x128xbf16, #tpu.memory_space<vmem>>, vector<64x128xbf16>
    %c0_1 = arith.constant 0 : index
    %c0_2 = arith.constant 0 : index
    %1 = vector.load %arg2[%c0_1, %c0_2] : memref<128x384xbf16, #tpu.memory_space<vmem>>, vector<128x384xbf16>
    %cst = arith.constant dense<0.000000e+00> : vector<64x384xf32>
    %2 = tpu.matmul %0, %1, %cst {dimension_numbers = #tpu.dot_dimension_numbers<[1], [0], [0], [1], [0, 0, 1, 1], [], []>} : vector<64x128xbf16>, vector<128x384xbf16>, vector<64x384xf32> -> vector<64x384xf32>
    %c0_3 = arith.constant 0 : index
    %c0_4 = arith.constant 0 : index
    %3 = vector.load %arg3[%c0_3, %c0_4] : memref<1x384xf32, #tpu.memory_space<vmem>>, vector<1x384xf32>
    %4 = vector.broadcast %3 : vector<1x384xf32> to vector<64x384xf32>
    %5 = arith.addf %2, %4 : vector<64x384xf32>
    %6 = arith.truncf %5 : vector<64x384xf32> to vector<64x384xbf16>
    %c0_5 = arith.constant 0 : index
    %c0_6 = arith.constant 0 : index
    %7 = vector.load %arg4[%c0_5, %c0_6] : memref<64x384xbf16, #tpu.memory_space<vmem>>, vector<64x384xbf16>
    tpu.vector_store %arg4[%c0_5, %c0_6], %6 {strides = array<i32>} : memref<64x384xbf16, #tpu.memory_space<vmem>>, vector<64x384xbf16>,
    return
  }
  func.func @transform_0(%arg0: i32) -> (i32, i32) {
    %c0_i32 = arith.constant 0 : i32
    %c0_i32_0 = arith.constant 0 : i32
    return %arg0, %c0_i32 : i32, i32
  }
  func.func @transform_1(%arg0: i32) -> (i32, i32) {
    %c0_i32 = arith.constant 0 : i32
    %c0_i32_0 = arith.constant 0 : i32
    %c0_i32_1 = arith.constant 0 : i32
    return %c0_i32, %c0_i32_0 : i32, i32
  }
  func.func @transform_2(%arg0: i32) -> (i32, i32) {
    %c0_i32 = arith.constant 0 : i32
    %c0_i32_0 = arith.constant 0 : i32
    %c0_i32_1 = arith.constant 0 : i32
    return %c0_i32, %c0_i32_0 : i32, i32
  }
  func.func @transform_3(%arg0: i32) -> (i32, i32) {
    %c0_i32 = arith.constant 0 : i32
    %c0_i32_0 = arith.constant 0 : i32
    return %arg0, %c0_i32 : i32, i32
  }
}

</mosaic_0001>

<llo_original>
// kernel: tpu_custom_call.1
$region0: #{tpu_custom_call.1}
  #allocation0 [shape = 'u32[]', space=smem, size = 0x4, offset = 0x4, fixed_abs, tag = 'smem constant byte address 0x4 - core index']
  #allocation1 [shape = 'u32[144,128]{1,0:T(1,128)}', space=vmem, size = 0x12000, scoped, tag = 'internal scratch']
  %s0 = inlined_call_operand.hbm [shape: bf16[64,128], index: 0, kind: input, shape index: {}]
  %s1 = inlined_call_operand.hbm [shape: bf16[128,384], index: 1, kind: input, shape index: {}]
  %s2 = inlined_call_operand.vmem [shape: f32[1,384], index: 2, kind: input, shape index: {}]
  %s3 = inlined_call_operand.hbm [shape: bf16[64,384], index: 3, kind: output, shape index: {}]
  %s4 = sld [smem:[#allocation0]]
  $region30: #{tpu_custom_call.1} parent=0
    _
  %s6 = ssub.s32 1, %s4
  %s7 = scalar_select 0, %s6, %s4
  $region1: #{tpu_custom_call.1} parent=0
    #allocation2 [shape = 'u8[16384]{0}', space=vmem, size = 0x4000, scoped, tag = 'input window, operand 0, single buffered']
    #allocation3 [shape = 's32[1]{0}', space=sflag, size = 0x4, scoped, tag = 'scoped memory for tpu_custom_call.1']
    #allocation4 [shape = 's32[1]{0}', space=sflag, size = 0x4, scoped, tag = 'scoped memory for tpu_custom_call.1']
    #allocation5 [shape = 'u8[98304]{0}', space=vmem, size = 0x18000, scoped, tag = 'input window, operand 1, single buffered']
    #allocation6 [shape = 's32[1]{0}', space=sflag, size = 0x4, scoped, tag = 'scoped memory for tpu_custom_call.1']
    #allocation7 [shape = 'u8[49152]{0}', space=vmem, size = 0xc000, scoped, tag = 'output window, operand 0, single buffered']
    %8 = vsyncpa [#allocation3], 0
    %9 = vsyncpa [#allocation6], 0
    %10 = vsyncpa [#allocation4], 0
    // Predicated region
    $region2: #{tpu_custom_call.1} parent=1 // pred_check
      _
    $region3: #{tpu_custom_call.1} parent=1 // pred_check_branch
      %12 = sbr.rel (0) target = $region5
    $region4: #{tpu_custom_call.1} parent=1 // pred_region
      %s14 = ssub.s32 512, 512
      %15 = vsyncadd [#allocation3], %s14
      %s16 = sshll.u32 [#allocation2], 4
      %s17 = int_to_ptr.vmem [resolvable:$true] %s16
      %22 = dma.hbm_to_vmem [thread:$0]  %s0, 512, %s17, [#allocation3], 64, 64, 4
    $region5: #{tpu_custom_call.1} parent=1 // pred_fallthru
      _
    // Predicated region
    $region6: #{tpu_custom_call.1} parent=1 // pred_check
      _
    $region7: #{tpu_custom_call.1} parent=1 // pred_check_branch
      %24 = sbr.rel (0) target = $region9
    $region8: #{tpu_custom_call.1} parent=1 // pred_region
      %s26 = ssub.s32 3072, 3072
      %27 = vsyncadd [#allocation6], %s26
      %s28 = sshll.u32 [#allocation5], 4
      %s29 = int_to_ptr.vmem [resolvable:$true] %s28
      %34 = dma.hbm_to_vmem [thread:$0]  %s1, 3072, %s29, [#allocation6], 192, 192, 12
    $region9: #{tpu_custom_call.1} parent=1 // pred_fallthru
      _
    // Predicated region
    $region10: #{tpu_custom_call.1} parent=1 // pred_check
      _
    $region11: #{tpu_custom_call.1} parent=1 // pred_check_branch
      %36 = sbr.rel (0) target = $region13
    $region12: #{tpu_custom_call.1} parent=1 // pred_region
      _
    $region13: #{tpu_custom_call.1} parent=1 // pred_fallthru
      _
    // Predicated region
    $region14: #{tpu_custom_call.1} parent=1 // pred_check
      _
    $region15: #{tpu_custom_call.1} parent=1 // pred_check_branch
      %38 = sbr.rel (0) target = $region17
    $region16: #{tpu_custom_call.1} parent=1 // pred_region
      %39 = dma.done [#allocation3], 512
    $region17: #{tpu_custom_call.1} parent=1 // pred_fallthru
      _
    // Predicated region
    $region18: #{tpu_custom_call.1} parent=1 // pred_check
      _
    $region19: #{tpu_custom_call.1} parent=1 // pred_check_branch
      %41 = sbr.rel (0) target = $region21
    $region20: #{tpu_custom_call.1} parent=1 // pred_region
      %42 = dma.done [#allocation6], 3072
    $region21: #{tpu_custom_call.1} parent=1 // pred_fallthru
      _
    %v44 = vld [vmem:[#allocation2] sm:$0xf]
    %v45 = vld [vmem:[#allocation2 + $0x4] sm:$0xf]
    %v46 = vld [vmem:[#allocation2 + $0x8] sm:$0xf]
    %v47 = vld [vmem:[#allocation2 + $0xc] sm:$0xf]
    %v48 = vld [vmem:[#allocation2 + $0x10] sm:$0xf]
    %v49 = vld [vmem:[#allocation2 + $0x14] sm:$0xf]
    %v50 = vld [vmem:[#allocation2 + $0x18] sm:$0xf]
    %v51 = vld [vmem:[#allocation2 + $0x1c] sm:$0xf]
    %v52 = vld [vmem:[#allocation5] sm:$0xff]
    %v53 = vld [vmem:[#allocation5 + $0x8] sm:$0xf]
    %v54 = vld [vmem:[#allocation5 + $0xc] sm:$0xff]
    %v55 = vld [vmem:[#allocation5 + $0x14] sm:$0xf]
    %v56 = vld [vmem:[#allocation5 + $0x18] sm:$0xff]
    %v57 = vld [vmem:[#allocation5 + $0x20] sm:$0xf]
    %v58 = vld [vmem:[#allocation5 + $0x24] sm:$0xff]
    %v59 = vld [vmem:[#allocation5 + $0x2c] sm:$0xf]
    %v60 = vld [vmem:[#allocation5 + $0x30] sm:$0xff]
    %v61 = vld [vmem:[#allocation5 + $0x38] sm:$0xf]
    %v62 = vld [vmem:[#allocation5 + $0x3c] sm:$0xff]
    %v63 = vld [vmem:[#allocation5 + $0x44] sm:$0xf]
    %v64 = vld [vmem:[#allocation5 + $0x48] sm:$0xff]
    %v65 = vld [vmem:[#allocation5 + $0x50] sm:$0xf]
    %v66 = vld [vmem:[#allocation5 + $0x54] sm:$0xff]
    %v67 = vld [vmem:[#allocation5 + $0x5c] sm:$0xf]
    %v68 = vld [vmem:[#allocation5 + $0x60] sm:$0xff]
    %v69 = vld [vmem:[#allocation5 + $0x68] sm:$0xf]
    %v70 = vld [vmem:[#allocation5 + $0x6c] sm:$0xff]
    %v71 = vld [vmem:[#allocation5 + $0x74] sm:$0xf]
    %v72 = vld [vmem:[#allocation5 + $0x78] sm:$0xff]
    %v73 = vld [vmem:[#allocation5 + $0x80] sm:$0xf]
    %v74 = vld [vmem:[#allocation5 + $0x84] sm:$0xff]
    %v75 = vld [vmem:[#allocation5 + $0x8c] sm:$0xf]
    %v76 = vld [vmem:[#allocation5 + $0x90] sm:$0xff]
    %v77 = vld [vmem:[#allocation5 + $0x98] sm:$0xf]
    %v78 = vld [vmem:[#allocation5 + $0x9c] sm:$0xff]
    %v79 = vld [vmem:[#allocation5 + $0xa4] sm:$0xf]
    %v80 = vld [vmem:[#allocation5 + $0xa8] sm:$0xff]
    %v81 = vld [vmem:[#allocation5 + $0xb0] sm:$0xf]
    %v82 = vld [vmem:[#allocation5 + $0xb4] sm:$0xff]
    %v83 = vld [vmem:[#allocation5 + $0xbc] sm:$0xf]
    %v84 = vld [vmem:[%s2] sm:$0x7]
    %v86 = vlaneseq
    %v87 = vshrl.u32 %v86, 7
    %v88 = vsub.s32 0, %v87
    %v89 = vrot.slane %v84, %v88
    %v90 = vlaneseq
    %v91 = vshrl.u32 %v90, 7
    %v92 = vsub.s32 1, %v91
    %v93 = vrot.slane %v84, %v92
    %v94 = vlaneseq
    %v95 = vshrl.u32 %v94, 7
    %v96 = vsub.s32 2, %v95
    %v97 = vrot.slane %v84, %v96
    %v109 = vunpack.c.l.b16 %v44
    %v110 = vunpack.c.l.b16 %v45
    %v111 = vunpack.c.l.b16 %v46
    %v112 = vunpack.c.l.b16 %v47
    %v113 = vunpack.c.l.b16 %v48
    %v114 = vunpack.c.l.b16 %v49
    %v115 = vunpack.c.l.b16 %v50
    %v116 = vunpack.c.l.b16 %v51
    %v117 = vpack.c.b16 %v110, %v109
    %v118 = vpack.c.b16 %v112, %v111
    %v119 = vpack.c.b16 %v114, %v113
    %v120 = vpack.c.b16 %v116, %v115
    %v157 = vunpack.c.l.b16 %v52
    %v158 = vunpack.c.h.b16 %v52
    %v159 = vunpack.c.l.b16 %v53
    %v160 = vunpack.c.l.b16 %v54
    %v161 = vunpack.c.h.b16 %v54
    %v162 = vunpack.c.l.b16 %v55
    %v163 = vunpack.c.l.b16 %v56
    %v164 = vunpack.c.h.b16 %v56
    %v165 = vunpack.c.l.b16 %v57
    %v166 = vunpack.c.l.b16 %v58
    %v167 = vunpack.c.h.b16 %v58
    %v168 = vunpack.c.l.b16 %v59
    %v169 = vunpack.c.l.b16 %v60
    %v170 = vunpack.c.h.b16 %v60
    %v171 = vunpack.c.l.b16 %v61
    %v172 = vunpack.c.l.b16 %v62
    %v173 = vunpack.c.h.b16 %v62
    %v174 = vunpack.c.l.b16 %v63
    %v175 = vunpack.c.l.b16 %v64
    %v176 = vunpack.c.h.b16 %v64
    %v177 = vunpack.c.l.b16 %v65
    %v178 = vunpack.c.l.b16 %v66
    %v179 = vunpack.c.h.b16 %v66
    %v180 = vunpack.c.l.b16 %v67
    %v181 = vunpack.c.l.b16 %v68
    %v182 = vunpack.c.h.b16 %v68
    %v183 = vunpack.c.l.b16 %v69
    %v184 = vunpack.c.l.b16 %v70
    %v185 = vunpack.c.h.b16 %v70
    %v186 = vunpack.c.l.b16 %v71
    %v187 = vunpack.c.l.b16 %v72
    %v188 = vunpack.c.h.b16 %v72
    %v189 = vunpack.c.l.b16 %v73
    %v190 = vunpack.c.l.b16 %v74
    %v191 = vunpack.c.h.b16 %v74
    %v192 = vunpack.c.l.b16 %v75
    %v193 = vunpack.c.l.b16 %v76
    %v194 = vunpack.c.h.b16 %v76
    %v195 = vunpack.c.l.b16 %v77
    %v196 = vunpack.c.l.b16 %v78
    %v197 = vunpack.c.h.b16 %v78
    %v198 = vunpack.c.l.b16 %v79
    %v199 = vunpack.c.l.b16 %v80
    %v200 = vunpack.c.h.b16 %v80
    %v201 = vunpack.c.l.b16 %v81
    %v202 = vunpack.c.l.b16 %v82
    %v203 = vunpack.c.h.b16 %v82
    %v204 = vunpack.c.l.b16 %v83
    %v205 = vpack.c.b16 %v160, %v157
    %v206 = vpack.c.b16 %v161, %v158
    %v207 = vpack.c.b16 %v162, %v159
    %v208 = vpack.c.b16 %v166, %v163
    %v209 = vpack.c.b16 %v167, %v164
    %v210 = vpack.c.b16 %v168, %v165
    %v211 = vpack.c.b16 %v172, %v169
    %v212 = vpack.c.b16 %v173, %v170
    %v213 = vpack.c.b16 %v174, %v171
    %v214 = vpack.c.b16 %v178, %v175
    %v215 = vpack.c.b16 %v179, %v176
    %v216 = vpack.c.b16 %v180, %v177
    %v217 = vpack.c.b16 %v184, %v181
    %v218 = vpack.c.b16 %v185, %v182
    %v219 = vpack.c.b16 %v186, %v183
    %v220 = vpack.c.b16 %v190, %v187
    %v221 = vpack.c.b16 %v191, %v188
    %v222 = vpack.c.b16 %v192, %v189
    %v223 = vpack.c.b16 %v196, %v193
    %v224 = vpack.c.b16 %v197, %v194
    %v225 = vpack.c.b16 %v198, %v195
    %v226 = vpack.c.b16 %v202, %v199
    %v227 = vpack.c.b16 %v203, %v200
    %v228 = vpack.c.b16 %v204, %v201
    %253 = vmatprep.subr.bf16.mxu0 %v206
    %254 = vmatpush1.bf16.msra.mxu0 %v205
    %255 = vmatprep.subr.bf16.mxu0 %v209
    %256 = vmatpush1.bf16.msra.mxu0 %v208
    %257 = vmatprep.subr.bf16.mxu0 %v212
    %258 = vmatpush1.bf16.msra.mxu0 %v211
    %259 = vmatprep.subr.bf16.mxu0 %v215
    %260 = vmatpush1.bf16.msra.mxu0 %v214
    %261 = vmatprep.subr.bf16.mxu0 %v218
    %262 = vmatpush1.bf16.msra.mxu0 %v217
    %263 = vmatprep.subr.bf16.mxu0 %v221
    %264 = vmatpush1.bf16.msra.mxu0 %v220
    %265 = vmatprep.subr.bf16.mxu0 %v224
    %266 = vmatpush1.bf16.msra.mxu0 %v223
    %267 = vmatprep.subr.bf16.mxu0 %v227
    %268 = vmatpush1.bf16.msra.mxu0 %v226
    %269 = vmatprep.subr.bf16.mxu0 0
    %270 = vmatpush1.bf16.msra.mxu0 0
    %271 = vmatprep.subr.bf16.mxu0 0
    %272 = vmatpush1.bf16.msra.mxu0 0
    %273 = vmatprep.subr.bf16.mxu0 0
    %274 = vmatpush1.bf16.msra.mxu0 0
    %275 = vmatprep.subr.bf16.mxu0 0
    %276 = vmatpush1.bf16.msra.mxu0 0
    %277 = vmatprep.subr.bf16.mxu0 0
    %278 = vmatpush1.bf16.msra.mxu0 0
    %279 = vmatprep.subr.bf16.mxu0 0
    %280 = vmatpush1.bf16.msra.mxu0 0
    %281 = vmatprep.subr.bf16.mxu0 0
    %282 = vmatpush1.bf16.msra.mxu0 0
    %283 = vmatprep.subr.bf16.mxu0 0
    %284 = vmatpush1.bf16.msra.mxu0 0
    %285 = vmatprep.mubr.bf16.mxu0 0
    %286 = vmatmul.mubr.bf16.gmra.mrb[0].mxu0 %v117
    %v287 = vpop.f32.mrb[0].mxu0
    %v288 = vadd.f32 %v89, %v287
    %v289 = vpop.f32.mrb[0].mxu0
    %v290 = vadd.f32 %v93, %v289
    %v291 = vpop.f32.mrb[0].mxu0
    %v292 = vadd.f32 %v89, %v291
    %v293 = vpop.f32.mrb[0].mxu0
    %v294 = vadd.f32 %v93, %v293
    %295 = vmatprep.mubr.bf16.mxu0 0
    %296 = vmatmul.mubr.bf16.gmra.mrb[0].mxu0 %v118
    %v297 = vpop.f32.mrb[0].mxu0
    %v298 = vadd.f32 %v89, %v297
    %v299 = vpop.f32.mrb[0].mxu0
    %v300 = vadd.f32 %v93, %v299
    %v301 = vpop.f32.mrb[0].mxu0
    %v302 = vadd.f32 %v89, %v301
    %v303 = vpop.f32.mrb[0].mxu0
    %v304 = vadd.f32 %v93, %v303
    %305 = vmatprep.mubr.bf16.mxu0 0
    %306 = vmatmul.mubr.bf16.gmra.mrb[0].mxu0 %v119
    %v307 = vpop.f32.mrb[0].mxu0
    %v308 = vadd.f32 %v89, %v307
    %v309 = vpop.f32.mrb[0].mxu0
    %v310 = vadd.f32 %v93, %v309
    %v311 = vpop.f32.mrb[0].mxu0
    %v312 = vadd.f32 %v89, %v311
    %v313 = vpop.f32.mrb[0].mxu0
    %v314 = vadd.f32 %v93, %v313
    %315 = vmatprep.mubr.bf16.mxu0 0
    %316 = vmatmul.mubr.bf16.gmra.mrb[0].mxu0 %v120
    %v317 = vpop.f32.mrb[0].mxu0
    %v318 = vadd.f32 %v89, %v317
    %v319 = vpop.f32.mrb[0].mxu0
    %v320 = vadd.f32 %v93, %v319
    %v321 = vpop.f32.mrb[0].mxu0
    %v322 = vadd.f32 %v89, %v321
    %v323 = vpop.f32.mrb[0].mxu0
    %v324 = vadd.f32 %v93, %v323
    %325 = vdwg.mxu0
    %326 = vmatprep.subr.bf16.mxu0 0
    %327 = vmatpush1.bf16.msra.mxu0 %v207
    %328 = vmatprep.subr.bf16.mxu0 0
    %329 = vmatpush1.bf16.msra.mxu0 %v210
    %330 = vmatprep.subr.bf16.mxu0 0
    %331 = vmatpush1.bf16.msra.mxu0 %v213
    %332 = vmatprep.subr.bf16.mxu0 0
    %333 = vmatpush1.bf16.msra.mxu0 %v216
    %334 = vmatprep.subr.bf16.mxu0 0
    %335 = vmatpush1.bf16.msra.mxu0 %v219
    %336 = vmatprep.subr.bf16.mxu0 0
    %337 = vmatpush1.bf16.msra.mxu0 %v222
    %338 = vmatprep.subr.bf16.mxu0 0
    %339 = vmatpush1.bf16.msra.mxu0 %v225
    %340 = vmatprep.subr.bf16.mxu0 0
    %341 = vmatpush1.bf16.msra.mxu0 %v228
    %342 = vmatprep.subr.bf16.mxu0 0
    %343 = vmatpush1.bf16.msra.mxu0 0
    %344 = vmatprep.subr.bf16.mxu0 0
    %345 = vmatpush1.bf16.msra.mxu0 0
    %346 = vmatprep.subr.bf16.mxu0 0
    %347 = vmatpush1.bf16.msra.mxu0 0
    %348 = vmatprep.subr.bf16.mxu0 0
    %349 = vmatpush1.bf16.msra.mxu0 0
    %350 = vmatprep.subr.bf16.mxu0 0
    %351 = vmatpush1.bf16.msra.mxu0 0
    %352 = vmatprep.subr.bf16.mxu0 0
    %353 = vmatpush1.bf16.msra.mxu0 0
    %354 = vmatprep.subr.bf16.mxu0 0
    %355 = vmatpush1.bf16.msra.mxu0 0
    %356 = vmatprep.subr.bf16.mxu0 0
    %357 = vmatpush1.bf16.msra.mxu0 0
    %358 = vmatprep.mubr.bf16.mxu0 0
    %359 = vmatmul.mubr.bf16.gmra.mrb[0].mxu0 %v117
    %v360 = vpop.f32.mrb[0].mxu0
    %v361 = vadd.f32 %v97, %v360
    %v362 = vpop.f32.mrb[0].mxu0
    %v363 = vpop.f32.mrb[0].mxu0
    %v364 = vadd.f32 %v97, %v363
    %v365 = vpop.f32.mrb[0].mxu0
    %366 = vmatprep.mubr.bf16.mxu0 0
    %367 = vmatmul.mubr.bf16.gmra.mrb[0].mxu0 %v118
    %v368 = vpop.f32.mrb[0].mxu0
    %v369 = vadd.f32 %v97, %v368
    %v370 = vpop.f32.mrb[0].mxu0
    %v371 = vpop.f32.mrb[0].mxu0
    %v372 = vadd.f32 %v97, %v371
    %v373 = vpop.f32.mrb[0].mxu0
    %374 = vmatprep.mubr.bf16.mxu0 0
    %375 = vmatmul.mubr.bf16.gmra.mrb[0].mxu0 %v119
    %v376 = vpop.f32.mrb[0].mxu0
    %v377 = vadd.f32 %v97, %v376
    %v378 = vpop.f32.mrb[0].mxu0
    %v379 = vpop.f32.mrb[0].mxu0
    %v380 = vadd.f32 %v97, %v379
    %v381 = vpop.f32.mrb[0].mxu0
    %382 = vmatprep.mubr.bf16.mxu0 0
    %383 = vmatmul.mubr.bf16.gmra.mrb[0].mxu0 %v120
    %v384 = vpop.f32.mrb[0].mxu0
    %v385 = vadd.f32 %v97, %v384
    %v386 = vpop.f32.mrb[0].mxu0
    %v387 = vpop.f32.mrb[0].mxu0
    %v388 = vadd.f32 %v97, %v387
    %v389 = vpop.f32.mrb[0].mxu0
    %390 = vdwg.mxu0
    %v391 = vpack.c.bf16 %v292, %v288
    %v392 = vpack.c.bf16 %v294, %v290
    %v393 = vpack.c.bf16 %v364, %v361
    %v394 = vpack.c.bf16 %v302, %v298
    %v395 = vpack.c.bf16 %v304, %v300
    %v396 = vpack.c.bf16 %v372, %v369
    %v397 = vpack.c.bf16 %v312, %v308
    %v398 = vpack.c.bf16 %v314, %v310
    %v399 = vpack.c.bf16 %v380, %v377
    %v400 = vpack.c.bf16 %v322, %v318
    %v401 = vpack.c.bf16 %v324, %v320
    %v402 = vpack.c.bf16 %v388, %v385
    %v415 = vunpack.c.l.b16 %v391
    %v416 = vunpack.c.l.b16 %v392
    %v417 = vunpack.c.l.b16 %v393
    %v418 = vunpack.c.h.b16 %v391
    %v419 = vunpack.c.h.b16 %v392
    %v420 = vunpack.c.h.b16 %v393
    %v421 = vunpack.c.l.b16 %v394
    %v422 = vunpack.c.l.b16 %v395
    %v423 = vunpack.c.l.b16 %v396
    %v424 = vunpack.c.h.b16 %v394
    %v425 = vunpack.c.h.b16 %v395
    %v426 = vunpack.c.h.b16 %v396
    %v427 = vunpack.c.l.b16 %v397
    %v428 = vunpack.c.l.b16 %v398
    %v429 = vunpack.c.l.b16 %v399
    %v430 = vunpack.c.h.b16 %v397
    %v431 = vunpack.c.h.b16 %v398
    %v432 = vunpack.c.h.b16 %v399
    %v433 = vunpack.c.l.b16 %v400
    %v434 = vunpack.c.l.b16 %v401
    %v435 = vunpack.c.l.b16 %v402
    %v436 = vunpack.c.h.b16 %v400
    %v437 = vunpack.c.h.b16 %v401
    %v438 = vunpack.c.h.b16 %v402
    %v439 = vpack.c.b16 %v416, %v415
    %v440 = vpack.c.b16 %v417, %v417
    %v441 = vpack.c.b16 %v419, %v418
    %v442 = vpack.c.b16 %v420, %v420
    %v443 = vpack.c.b16 %v422, %v421
    %v444 = vpack.c.b16 %v423, %v423
    %v445 = vpack.c.b16 %v425, %v424
    %v446 = vpack.c.b16 %v426, %v426
    %v447 = vpack.c.b16 %v428, %v427
    %v448 = vpack.c.b16 %v429, %v429
    %v449 = vpack.c.b16 %v431, %v430
    %v450 = vpack.c.b16 %v432, %v432
    %v451 = vpack.c.b16 %v434, %v433
    %v452 = vpack.c.b16 %v435, %v435
    %v453 = vpack.c.b16 %v437, %v436
    %v454 = vpack.c.b16 %v438, %v438
    %471 = vst [vmem:[#allocation7] sm:$0xff] %v439
    %472 = vst [vmem:[#allocation7 + $0x8] sm:$0xf] %v440
    %473 = vst [vmem:[#allocation7 + $0xc] sm:$0xff] %v441
    %474 = vst [vmem:[#allocation7 + $0x14] sm:$0xf] %v442
    %475 = vst [vmem:[#allocation7 + $0x18] sm:$0xff] %v443
    %476 = vst [vmem:[#allocation7 + $0x20] sm:$0xf] %v444
    %477 = vst [vmem:[#allocation7 + $0x24] sm:$0xff] %v445
    %478 = vst [vmem:[#allocation7 + $0x2c] sm:$0xf] %v446
    %479 = vst [vmem:[#allocation7 + $0x30] sm:$0xff] %v447
    %480 = vst [vmem:[#allocation7 + $0x38] sm:$0xf] %v448
    %481 = vst [vmem:[#allocation7 + $0x3c] sm:$0xff] %v449
    %482 = vst [vmem:[#allocation7 + $0x44] sm:$0xf] %v450
    %483 = vst [vmem:[#allocation7 + $0x48] sm:$0xff] %v451
    %484 = vst [vmem:[#allocation7 + $0x50] sm:$0xf] %v452
    %485 = vst [vmem:[#allocation7 + $0x54] sm:$0xff] %v453
    %486 = vst [vmem:[#allocation7 + $0x5c] sm:$0xf] %v454
    // Predicated region
    $region22: #{tpu_custom_call.1} parent=1 // pred_check
      _
    $region23: #{tpu_custom_call.1} parent=1 // pred_check_branch
      %488 = sbr.rel (0) target = $region25
    $region24: #{tpu_custom_call.1} parent=1 // pred_region
      %s490 = ssub.s32 1536, 1536
      %491 = vsyncadd [#allocation4], %s490
      %s492 = sshll.u32 [#allocation7], 4
      %s493 = int_to_ptr.vmem [resolvable:$true] %s492
      %498 = dma.vmem_to_hbm [thread:$0]  %s493, 1536, %s3, [#allocation4], 192, 192, 12
    $region25: #{tpu_custom_call.1} parent=1 // pred_fallthru
      _
    // Predicated region
    $region26: #{tpu_custom_call.1} parent=1 // pred_check
      _
    $region27: #{tpu_custom_call.1} parent=1 // pred_check_branch
      %500 = sbr.rel (0) target = $region29
    $region28: #{tpu_custom_call.1} parent=1 // pred_region
      %501 = dma.done [#allocation4], 1536
    $region29: #{tpu_custom_call.1} parent=1 // pred_fallthru
      _
    %502 = vsyncpa [#allocation3], 1
    %503 = vsyncpa [#allocation6], 1
    %504 = vsyncpa [#allocation4], 1

</llo_original>
